<compile_context>
chip_gen: v6e
topology: v6e:2x2x1
jax: 0.10.0
libtpu: 0.0.40
codegen_flags: <defaults>
</compile_context>

<pallas_src>
import functools

import jax
import jax.numpy as jnp
from jax.experimental import pallas as pl
from jax.experimental.pallas import tpu as pltpu


def head_kernel(feat_ref, w_ref, b_ref, out_ref, *, num_pred_cols):
    # feat_ref: [B, C] pooled (pre-ReLU) backbone features, f32
    # w_ref:    [C, 128] fused (fc1 | confidences | zero-pad) weight, bf16
    # b_ref:    [1, 128] fused bias, f32
    # out_ref:  [B, 128] f32: lanes [0:P) = predictions, [P:P+3) = confidences
    feat = jnp.maximum(feat_ref[...], 0.0)                       # ReLU (f32, VPU)

    # One fused MXU matmul: bf16 x bf16 -> f32 accumulate.
    out = jnp.dot(feat.astype(jnp.bfloat16), w_ref[...],
                  preferred_element_type=jnp.float32) + b_ref[...]   # [B, 128]

    B, NPAD = out.shape
    lane = jax.lax.broadcasted_iota(jnp.int32, (B, NPAD), 1)
    conf_mask = (lane >= num_pred_cols) & (lane < num_pred_cols + 3)

    # Masked softmax over the 3 confidence lanes (exp(-inf) = 0 elsewhere).
    logits = jnp.where(conf_mask, out, -jnp.inf)
    m = jnp.max(logits, axis=-1, keepdims=True)
    e = jnp.exp(logits - m)
    conf = e * pl.reciprocal(jnp.sum(e, axis=-1, keepdims=True), approx=False)

    # Single lane-dense store: preds lanes untouched, conf lanes replaced.
    out_ref[...] = jnp.where(conf_mask, conf, out)


def convnet1_head(x_nchw, w1, b1, wc, bc, *, num_trajectories, future_num_frames):
    """x_nchw: [B, C, H, W] backbone feature map (float32)."""
    B, C, H, W = x_nchw.shape
    P = w1.shape[1]                          # num_targets * num_trajectories
    NPAD = 128
    assert P + 3 <= NPAD, "fused head exceeds one lane tile"

    # AdaptiveAvgPool2d((1,1)) + flatten, on the contiguous NCHW layout
    # (keeps the kernel input to [B, C]; ReLU stays inside the kernel).
    pooled = jnp.mean(x_nchw, axis=(2, 3))                       # [B, C] f32

    # Fuse and lane-pad the two head Linears: [C, P] | [C, 3] | 0 -> [C, 128].
    w_cat = jnp.concatenate(
        [w1, wc, jnp.zeros((C, NPAD - P - 3), w1.dtype)], axis=1
    ).astype(jnp.bfloat16)                                       # [C, 128] bf16
    b_cat = jnp.concatenate(
        [b1, bc, jnp.zeros((NPAD - P - 3,), b1.dtype)]
    ).reshape(1, NPAD).astype(jnp.float32)                       # [1, 128] f32

    vmem = pl.BlockSpec(memory_space=pltpu.MemorySpace.VMEM)
    out = pl.pallas_call(
        functools.partial(head_kernel, num_pred_cols=P),
        out_shape=jax.ShapeDtypeStruct((B, NPAD), jnp.float32),
        in_specs=[vmem, vmem, vmem],
        out_specs=vmem,
        compiler_params=pltpu.CompilerParams(vmem_limit_bytes=32 << 20),
    )(pooled, w_cat, b_cat)

    # predictions.view(-1, num_trajectories, future_num_frames, 2)
    preds = out[:, :P].reshape(B, num_trajectories, future_num_frames, 2)
    conf = out[:, P:P + 3]
    return preds, conf


if __name__ == "__main__":
    # Small, module-consistent config.
    future_num_frames = 8
    num_trajectories = 3
    num_targets = 2 * future_num_frames                  # 16
    num_out_backbone = 2048                               # xception41 / xception71

    B, C, H, W = 2, num_out_backbone, 4, 4

    key = jax.random.PRNGKey(0)
    k_x, k_w1, k_b1, k_wc, k_bc = jax.random.split(key, 5)

    # Deterministic "backbone feature map" input and Linear params
    # (nn.Linear-style uniform(-1/sqrt(fan_in), 1/sqrt(fan_in)) init).
    x = jax.random.normal(k_x, (B, C, H, W), dtype=jnp.float32)

    bound = 1.0 / (C ** 0.5)
    w1 = jax.random.uniform(k_w1, (C, num_targets * num_trajectories),
                            minval=-bound, maxval=bound, dtype=jnp.float32)
    b1 = jax.random.uniform(k_b1, (num_targets * num_trajectories,),
                            minval=-bound, maxval=bound, dtype=jnp.float32)
    wc = jax.random.uniform(k_wc, (C, 3),
                            minval=-bound, maxval=bound, dtype=jnp.float32)
    bc = jax.random.uniform(k_bc, (3,),
                            minval=-bound, maxval=bound, dtype=jnp.float32)

    preds, conf = convnet1_head(
        x, w1, b1, wc, bc,
        num_trajectories=num_trajectories,
        future_num_frames=future_num_frames,
    )
    jax.block_until_ready((preds, conf))

    # Sanity checks against a pure-JAX f32 reference (tolerances loosened for
    # the bf16 weight/activation cast inside the kernel).
    feat_ref = jnp.maximum(jnp.mean(x, axis=(2, 3)), 0.0)
    preds_ref = (feat_ref @ w1 + b1).reshape(B, num_trajectories, future_num_frames, 2)
    conf_ref = jax.nn.softmax(feat_ref @ wc + bc, axis=1)

    assert preds.shape == (B, num_trajectories, future_num_frames, 2)
    assert conf.shape == (B, 3)
    assert jnp.allclose(preds, preds_ref, atol=5e-3, rtol=5e-2)
    assert jnp.allclose(conf, conf_ref, atol=5e-3, rtol=5e-2)
    assert jnp.allclose(jnp.sum(conf, axis=1), 1.0, atol=1e-5)

    print("KERNEL_OK")
</pallas_src>

<mosaic_0001>
module attributes {stable_mosaic.version = 11 : i64} {
  func.func @head_kernel(%arg0: memref<2x2048xf32, #tpu.memory_space<vmem>>, %arg1: memref<2048x128xbf16, #tpu.memory_space<vmem>>, %arg2: memref<1x128xf32, #tpu.memory_space<vmem>>, %arg3: memref<2x128xf32, #tpu.memory_space<vmem>>) attributes {dimension_semantics = [], scalar_prefetch = 0 : i64, scratch_operands = 0 : i64, tpu.core_type = #tpu.core_type<tc>} {
    %c0 = arith.constant 0 : index
    %c0_0 = arith.constant 0 : index
    %0 = vector.load %arg0[%c0, %c0_0] : memref<2x2048xf32, #tpu.memory_space<vmem>>, vector<2x2048xf32>
    %cst = arith.constant 0.000000e+00 : f32
    %1 = vector.broadcast %cst : f32 to vector<2x2048xf32>
    %2 = arith.maximumf %0, %1 : vector<2x2048xf32>
    %3 = arith.truncf %2 : vector<2x2048xf32> to vector<2x2048xbf16>
    %c0_1 = arith.constant 0 : index
    %c0_2 = arith.constant 0 : index
    %4 = vector.load %arg1[%c0_1, %c0_2] : memref<2048x128xbf16, #tpu.memory_space<vmem>>, vector<2048x128xbf16>
    %cst_3 = arith.constant dense<0.000000e+00> : vector<2x128xf32>
    %5 = tpu.matmul %3, %4, %cst_3 {dimension_numbers = #tpu.dot_dimension_numbers<[1], [0], [0], [1], [0, 0, 1, 1], [], []>} : vector<2x2048xbf16>, vector<2048x128xbf16>, vector<2x128xf32> -> vector<2x128xf32>
    %c0_4 = arith.constant 0 : index
    %c0_5 = arith.constant 0 : index
    %6 = vector.load %arg2[%c0_4, %c0_5] : memref<1x128xf32, #tpu.memory_space<vmem>>, vector<1x128xf32>
    %7 = vector.broadcast %6 : vector<1x128xf32> to vector<2x128xf32>
    %8 = arith.addf %5, %7 : vector<2x128xf32>
    %9 = tpu.iota {dimensions = array<i32: 1>} : vector<2x128xi32>
    %c48_i32 = arith.constant 48 : i32
    %10 = vector.broadcast %c48_i32 : i32 to vector<2x128xi32>
    %11 = arith.cmpi sge, %9, %10 : vector<2x128xi32>
    %c51_i32 = arith.constant 51 : i32
    %12 = vector.broadcast %c51_i32 : i32 to vector<2x128xi32>
    %13 = arith.cmpi slt, %9, %12 : vector<2x128xi32>
    %14 = arith.andi %11, %13 : vector<2x128xi1>
    %cst_6 = arith.constant 0xFF800000 : f32
    %15 = vector.broadcast %cst_6 : f32 to vector<2x128xf32>
    %16 = arith.select %14, %8, %15 : vector<2x128xi1>, vector<2x128xf32>
    %cst_7 = arith.constant dense<0xFF800000> : vector<2xf32>
    %17 = vector.multi_reduction <maximumf>, %16, %cst_7 [1] : vector<2x128xf32> to vector<2xf32>
    %18 = vector.shape_cast %17 : vector<2xf32> to vector<2x1xf32>
    %19 = vector.broadcast %18 : vector<2x1xf32> to vector<2x128xf32>
    %20 = arith.subf %16, %19 : vector<2x128xf32>
    %21 = math.exp %20 : vector<2x128xf32>
    %cst_8 = arith.constant dense<0.000000e+00> : vector<2xf32>
    %22 = vector.multi_reduction <add>, %21, %cst_8 [1] : vector<2x128xf32> to vector<2xf32>
    %23 = vector.shape_cast %22 : vector<2xf32> to vector<2x1xf32>
    %24 = tpu.reciprocal %23 : vector<2x1xf32> -> vector<2x1xf32>
    %25 = vector.broadcast %24 : vector<2x1xf32> to vector<2x128xf32>
    %26 = arith.mulf %21, %25 : vector<2x128xf32>
    %27 = arith.select %14, %26, %8 : vector<2x128xi1>, vector<2x128xf32>
    %c0_9 = arith.constant 0 : index
    %c0_10 = arith.constant 0 : index
    %28 = vector.load %arg3[%c0_9, %c0_10] : memref<2x128xf32, #tpu.memory_space<vmem>>, vector<2x128xf32>
    tpu.vector_store %arg3[%c0_9, %c0_10], %27 {strides = array<i32>} : memref<2x128xf32, #tpu.memory_space<vmem>>, vector<2x128xf32>,
    return
  }
}

</mosaic_0001>

<llo_original>
// kernel: tpu_custom_call.1
$region0: #{tpu_custom_call.1}
  #allocation0 [shape = 'u32[]', space=smem, size = 0x4, offset = 0x4, fixed_abs, tag = 'smem constant byte address 0x4 - core index']
  #allocation1 [shape = 'u32[144,128]{1,0:T(1,128)}', space=vmem, size = 0x12000, scoped, tag = 'internal scratch']
  %s0 = inlined_call_operand.hbm [shape: f32[2,2048], index: 0, kind: input, shape index: {}]
  %s1 = inlined_call_operand.hbm [shape: bf16[2048,128], index: 1, kind: input, shape index: {}]
  %s2 = inlined_call_operand.vmem [shape: f32[1,128], index: 2, kind: input, shape index: {}]
  %s3 = inlined_call_operand.hbm [shape: f32[2,128], index: 3, kind: output, shape index: {}]
  %s4 = sld [smem:[#allocation0]]
  $region30: #{tpu_custom_call.1} parent=0
    _
  %s6 = ssub.s32 1, %s4
  %s7 = scalar_select 0, %s6, %s4
  $region1: #{tpu_custom_call.1} parent=0
    #allocation2 [shape = 'u8[16384]{0}', space=vmem, size = 0x4000, scoped, tag = 'input window, operand 0, single buffered']
    #allocation3 [shape = 's32[1]{0}', space=sflag, size = 0x4, scoped, tag = 'scoped memory for tpu_custom_call.1']
    #allocation4 [shape = 's32[1]{0}', space=sflag, size = 0x4, scoped, tag = 'scoped memory for tpu_custom_call.1']
    #allocation5 [shape = 'u8[524288]{0}', space=vmem, size = 0x80000, scoped, tag = 'input window, operand 1, single buffered']
    #allocation6 [shape = 's32[1]{0}', space=sflag, size = 0x4, scoped, tag = 'scoped memory for tpu_custom_call.1']
    #allocation7 [shape = 'u8[1024]{0}', space=vmem, size = 0x400, scoped, tag = 'output window, operand 0, single buffered']
    %8 = vsyncpa [#allocation3], 0
    %9 = vsyncpa [#allocation6], 0
    %10 = vsyncpa [#allocation4], 0
    // Predicated region
    $region2: #{tpu_custom_call.1} parent=1 // pred_check
      _
    $region3: #{tpu_custom_call.1} parent=1 // pred_check_branch
      %12 = sbr.rel (0) target = $region5
    $region4: #{tpu_custom_call.1} parent=1 // pred_region
      %s14 = ssub.s32 512, 512
      %15 = vsyncadd [#allocation3], %s14
      %s17 = sshll.u32 [#allocation2], 4
      %s18 = int_to_ptr.vmem [resolvable:$true] %s17
      %20 = dma.hbm_to_vmem [thread:$0]  %s0, 512, %s18, [#allocation3]
    $region5: #{tpu_custom_call.1} parent=1 // pred_fallthru
      _
    // Predicated region
    $region6: #{tpu_custom_call.1} parent=1 // pred_check
      _
    $region7: #{tpu_custom_call.1} parent=1 // pred_check_branch
      %22 = sbr.rel (0) target = $region9
    $region8: #{tpu_custom_call.1} parent=1 // pred_region
      %s24 = ssub.s32 16384, 16384
      %25 = vsyncadd [#allocation6], %s24
      %s26 = sshll.u32 [#allocation5], 4
      %s27 = int_to_ptr.vmem [resolvable:$true] %s26
      %32 = dma.hbm_to_vmem [thread:$0]  %s1, 16384, %s27, [#allocation6], 64, 64, 4
    $region9: #{tpu_custom_call.1} parent=1 // pred_fallthru
      _
    // Predicated region
    $region10: #{tpu_custom_call.1} parent=1 // pred_check
      _
    $region11: #{tpu_custom_call.1} parent=1 // pred_check_branch
      %34 = sbr.rel (0) target = $region13
    $region12: #{tpu_custom_call.1} parent=1 // pred_region
      _
    $region13: #{tpu_custom_call.1} parent=1 // pred_fallthru
      _
    // Predicated region
    $region14: #{tpu_custom_call.1} parent=1 // pred_check
      _
    $region15: #{tpu_custom_call.1} parent=1 // pred_check_branch
      %36 = sbr.rel (0) target = $region17
    $region16: #{tpu_custom_call.1} parent=1 // pred_region
      %37 = dma.done [#allocation3], 512
    $region17: #{tpu_custom_call.1} parent=1 // pred_fallthru
      _
    // Predicated region
    $region18: #{tpu_custom_call.1} parent=1 // pred_check
      _
    $region19: #{tpu_custom_call.1} parent=1 // pred_check_branch
      %39 = sbr.rel (0) target = $region21
    $region20: #{tpu_custom_call.1} parent=1 // pred_region
      %40 = dma.done [#allocation6], 16384
    $region21: #{tpu_custom_call.1} parent=1 // pred_fallthru
      _
    %v42 = vld [vmem:[#allocation2] sm:$0xff]
    %v43 = vld [vmem:[#allocation2 + $0x8] sm:$0xff]
    %v44 = vld [vmem:[#allocation2 + $0x10] sm:$0xff]
    %v45 = vld [vmem:[#allocation2 + $0x18] sm:$0xff]
    %v46 = vmax.f32 %v42, 0.0
    %v47 = vmax.f32 %v43, 0.0
    %v48 = vmax.f32 %v44, 0.0
    %v49 = vmax.f32 %v45, 0.0
    %v54 = vcombine.high %v46, %v46
    %v56 = vunpack.c.l.s4 1983009808
    %v57 = vunpack.c.0.s8 %v56
    %v58 = vlaneseq
    %v59 = vshrl.u32 %v58, 7
    %v60 = vsub.s32 %v57, %v59
    %v61 = vrot.slane %v46, %v60
    %v63 = vunpack.c.l.s4 1983009808
    %v64 = vunpack.c.0.s8 %v63
    %v65 = vlaneseq
    %v66 = vshrl.u32 %v65, 7
    %v67 = vsub.s32 %v64, %v66
    %v68 = vrot.slane %v54, %v67
    %v69 = vcombine.high %v61, %v61
    %v70 = vcombine.high %v68, %v68
    %v71 = vcombine.high %v47, %v47
    %v73 = vunpack.c.l.s4 1983009808
    %v74 = vunpack.c.0.s8 %v73
    %v75 = vlaneseq
    %v76 = vshrl.u32 %v75, 7
    %v77 = vsub.s32 %v74, %v76
    %v78 = vrot.slane %v47, %v77
    %v80 = vunpack.c.l.s4 1983009808
    %v81 = vunpack.c.0.s8 %v80
    %v82 = vlaneseq
    %v83 = vshrl.u32 %v82, 7
    %v84 = vsub.s32 %v81, %v83
    %v85 = vrot.slane %v71, %v84
    %v86 = vcombine.high %v78, %v78
    %v87 = vcombine.high %v85, %v85
    %v88 = vcombine.high %v48, %v48
    %v90 = vunpack.c.l.s4 1983009808
    %v91 = vunpack.c.0.s8 %v90
    %v92 = vlaneseq
    %v93 = vshrl.u32 %v92, 7
    %v94 = vsub.s32 %v91, %v93
    %v95 = vrot.slane %v48, %v94
    %v97 = vunpack.c.l.s4 1983009808
    %v98 = vunpack.c.0.s8 %v97
    %v99 = vlaneseq
    %v100 = vshrl.u32 %v99, 7
    %v101 = vsub.s32 %v98, %v100
    %v102 = vrot.slane %v88, %v101
    %v103 = vcombine.high %v95, %v95
    %v104 = vcombine.high %v102, %v102
    %v105 = vcombine.high %v49, %v49
    %v107 = vunpack.c.l.s4 1983009808
    %v108 = vunpack.c.0.s8 %v107
    %v109 = vlaneseq
    %v110 = vshrl.u32 %v109, 7
    %v111 = vsub.s32 %v108, %v110
    %v112 = vrot.slane %v49, %v111
    %v114 = vunpack.c.l.s4 1983009808
    %v115 = vunpack.c.0.s8 %v114
    %v116 = vlaneseq
    %v117 = vshrl.u32 %v116, 7
    %v118 = vsub.s32 %v115, %v117
    %v119 = vrot.slane %v105, %v118
    %v120 = vcombine.high %v112, %v112
    %v121 = vcombine.high %v119, %v119
    %v138 = vpack.c.bf16 %v61, %v61
    %v139 = vpack.c.bf16 %v69, %v69
    %v140 = vpack.c.bf16 %v68, %v68
    %v141 = vpack.c.bf16 %v70, %v70
    %v142 = vpack.c.bf16 %v78, %v78
    %v143 = vpack.c.bf16 %v86, %v86
    %v144 = vpack.c.bf16 %v85, %v85
    %v145 = vpack.c.bf16 %v87, %v87
    %v146 = vpack.c.bf16 %v95, %v95
    %v147 = vpack.c.bf16 %v103, %v103
    %v148 = vpack.c.bf16 %v102, %v102
    %v149 = vpack.c.bf16 %v104, %v104
    %v150 = vpack.c.bf16 %v112, %v112
    %v151 = vpack.c.bf16 %v120, %v120
    %v152 = vpack.c.bf16 %v119, %v119
    %v153 = vpack.c.bf16 %v121, %v121
    %v154 = vld [vmem:[#allocation5] sm:$0xf]
    %v155 = vld [vmem:[#allocation5 + $0x4] sm:$0xf]
    %v156 = vld [vmem:[#allocation5 + $0x8] sm:$0xf]
    %v157 = vld [vmem:[#allocation5 + $0xc] sm:$0xf]
    %v158 = vld [vmem:[#allocation5 + $0x10] sm:$0xf]
    %v159 = vld [vmem:[#allocation5 + $0x14] sm:$0xf]
    %v160 = vld [vmem:[#allocation5 + $0x18] sm:$0xf]
    %v161 = vld [vmem:[#allocation5 + $0x1c] sm:$0xf]
    %v162 = vld [vmem:[#allocation5 + $0x20] sm:$0xf]
    %v163 = vld [vmem:[#allocation5 + $0x24] sm:$0xf]
    %v164 = vld [vmem:[#allocation5 + $0x28] sm:$0xf]
    %v165 = vld [vmem:[#allocation5 + $0x2c] sm:$0xf]
    %v166 = vld [vmem:[#allocation5 + $0x30] sm:$0xf]
    %v167 = vld [vmem:[#allocation5 + $0x34] sm:$0xf]
    %v168 = vld [vmem:[#allocation5 + $0x38] sm:$0xf]
    %v169 = vld [vmem:[#allocation5 + $0x3c] sm:$0xf]
    %v170 = vld [vmem:[#allocation5 + $0x40] sm:$0xf]
    %v171 = vld [vmem:[#allocation5 + $0x44] sm:$0xf]
    %v172 = vld [vmem:[#allocation5 + $0x48] sm:$0xf]
    %v173 = vld [vmem:[#allocation5 + $0x4c] sm:$0xf]
    %v174 = vld [vmem:[#allocation5 + $0x50] sm:$0xf]
    %v175 = vld [vmem:[#allocation5 + $0x54] sm:$0xf]
    %v176 = vld [vmem:[#allocation5 + $0x58] sm:$0xf]
    %v177 = vld [vmem:[#allocation5 + $0x5c] sm:$0xf]
    %v178 = vld [vmem:[#allocation5 + $0x60] sm:$0xf]
    %v179 = vld [vmem:[#allocation5 + $0x64] sm:$0xf]
    %v180 = vld [vmem:[#allocation5 + $0x68] sm:$0xf]
    %v181 = vld [vmem:[#allocation5 + $0x6c] sm:$0xf]
    %v182 = vld [vmem:[#allocation5 + $0x70] sm:$0xf]
    %v183 = vld [vmem:[#allocation5 + $0x74] sm:$0xf]
    %v184 = vld [vmem:[#allocation5 + $0x78] sm:$0xf]
    %v185 = vld [vmem:[#allocation5 + $0x7c] sm:$0xf]
    %v186 = vld [vmem:[#allocation5 + $0x80] sm:$0xf]
    %v187 = vld [vmem:[#allocation5 + $0x84] sm:$0xf]
    %v188 = vld [vmem:[#allocation5 + $0x88] sm:$0xf]
    %v189 = vld [vmem:[#allocation5 + $0x8c] sm:$0xf]
    %v190 = vld [vmem:[#allocation5 + $0x90] sm:$0xf]
    %v191 = vld [vmem:[#allocation5 + $0x94] sm:$0xf]
    %v192 = vld [vmem:[#allocation5 + $0x98] sm:$0xf]
    %v193 = vld [vmem:[#allocation5 + $0x9c] sm:$0xf]
    %v194 = vld [vmem:[#allocation5 + $0xa0] sm:$0xf]
    %v195 = vld [vmem:[#allocation5 + $0xa4] sm:$0xf]
    %v196 = vld [vmem:[#allocation5 + $0xa8] sm:$0xf]
    %v197 = vld [vmem:[#allocation5 + $0xac] sm:$0xf]
    %v198 = vld [vmem:[#allocation5 + $0xb0] sm:$0xf]
    %v199 = vld [vmem:[#allocation5 + $0xb4] sm:$0xf]
    %v200 = vld [vmem:[#allocation5 + $0xb8] sm:$0xf]
    %v201 = vld [vmem:[#allocation5 + $0xbc] sm:$0xf]
    %v202 = vld [vmem:[#allocation5 + $0xc0] sm:$0xf]
    %v203 = vld [vmem:[#allocation5 + $0xc4] sm:$0xf]
    %v204 = vld [vmem:[#allocation5 + $0xc8] sm:$0xf]
    %v205 = vld [vmem:[#allocation5 + $0xcc] sm:$0xf]
    %v206 = vld [vmem:[#allocation5 + $0xd0] sm:$0xf]
    %v207 = vld [vmem:[#allocation5 + $0xd4] sm:$0xf]
    %v208 = vld [vmem:[#allocation5 + $0xd8] sm:$0xf]
    %v209 = vld [vmem:[#allocation5 + $0xdc] sm:$0xf]
    %v210 = vld [vmem:[#allocation5 + $0xe0] sm:$0xf]
    %v211 = vld [vmem:[#allocation5 + $0xe4] sm:$0xf]
    %v212 = vld [vmem:[#allocation5 + $0xe8] sm:$0xf]
    %v213 = vld [vmem:[#allocation5 + $0xec] sm:$0xf]
    %v214 = vld [vmem:[#allocation5 + $0xf0] sm:$0xf]
    %v215 = vld [vmem:[#allocation5 + $0xf4] sm:$0xf]
    %v216 = vld [vmem:[#allocation5 + $0xf8] sm:$0xf]
    %v217 = vld [vmem:[#allocation5 + $0xfc] sm:$0xf]
    %v218 = vld [vmem:[#allocation5 + $0x100] sm:$0xf]
    %v219 = vld [vmem:[#allocation5 + $0x104] sm:$0xf]
    %v220 = vld [vmem:[#allocation5 + $0x108] sm:$0xf]
    %v221 = vld [vmem:[#allocation5 + $0x10c] sm:$0xf]
    %v222 = vld [vmem:[#allocation5 + $0x110] sm:$0xf]
    %v223 = vld [vmem:[#allocation5 + $0x114] sm:$0xf]
    %v224 = vld [vmem:[#allocation5 + $0x118] sm:$0xf]
    %v225 = vld [vmem:[#allocation5 + $0x11c] sm:$0xf]
    %v226 = vld [vmem:[#allocation5 + $0x120] sm:$0xf]
    %v227 = vld [vmem:[#allocation5 + $0x124] sm:$0xf]
    %v228 = vld [vmem:[#allocation5 + $0x128] sm:$0xf]
    %v229 = vld [vmem:[#allocation5 + $0x12c] sm:$0xf]
    %v230 = vld [vmem:[#allocation5 + $0x130] sm:$0xf]
    %v231 = vld [vmem:[#allocation5 + $0x134] sm:$0xf]
    %v232 = vld [vmem:[#allocation5 + $0x138] sm:$0xf]
    %v233 = vld [vmem:[#allocation5 + $0x13c] sm:$0xf]
    %v234 = vld [vmem:[#allocation5 + $0x140] sm:$0xf]
    %v235 = vld [vmem:[#allocation5 + $0x144] sm:$0xf]
    %v236 = vld [vmem:[#allocation5 + $0x148] sm:$0xf]
    %v237 = vld [vmem:[#allocation5 + $0x14c] sm:$0xf]
    %v238 = vld [vmem:[#allocation5 + $0x150] sm:$0xf]
    %v239 = vld [vmem:[#allocation5 + $0x154] sm:$0xf]
    %v240 = vld [vmem:[#allocation5 + $0x158] sm:$0xf]
    %v241 = vld [vmem:[#allocation5 + $0x15c] sm:$0xf]
    %v242 = vld [vmem:[#allocation5 + $0x160] sm:$0xf]
    %v243 = vld [vmem:[#allocation5 + $0x164] sm:$0xf]
    %v244 = vld [vmem:[#allocation5 + $0x168] sm:$0xf]
    %v245 = vld [vmem:[#allocation5 + $0x16c] sm:$0xf]
    %v246 = vld [vmem:[#allocation5 + $0x170] sm:$0xf]
    %v247 = vld [vmem:[#allocation5 + $0x174] sm:$0xf]
    %v248 = vld [vmem:[#allocation5 + $0x178] sm:$0xf]
    %v249 = vld [vmem:[#allocation5 + $0x17c] sm:$0xf]
    %v250 = vld [vmem:[#allocation5 + $0x180] sm:$0xf]
    %v251 = vld [vmem:[#allocation5 + $0x184] sm:$0xf]
    %v252 = vld [vmem:[#allocation5 + $0x188] sm:$0xf]
    %v253 = vld [vmem:[#allocation5 + $0x18c] sm:$0xf]
    %v254 = vld [vmem:[#allocation5 + $0x190] sm:$0xf]
    %v255 = vld [vmem:[#allocation5 + $0x194] sm:$0xf]
    %v256 = vld [vmem:[#allocation5 + $0x198] sm:$0xf]
    %v257 = vld [vmem:[#allocation5 + $0x19c] sm:$0xf]
    %v258 = vld [vmem:[#allocation5 + $0x1a0] sm:$0xf]
    %v259 = vld [vmem:[#allocation5 + $0x1a4] sm:$0xf]
    %v260 = vld [vmem:[#allocation5 + $0x1a8] sm:$0xf]
    %v261 = vld [vmem:[#allocation5 + $0x1ac] sm:$0xf]
    %v262 = vld [vmem:[#allocation5 + $0x1b0] sm:$0xf]
    %v263 = vld [vmem:[#allocation5 + $0x1b4] sm:$0xf]
    %v264 = vld [vmem:[#allocation5 + $0x1b8] sm:$0xf]
    %v265 = vld [vmem:[#allocation5 + $0x1bc] sm:$0xf]
    %v266 = vld [vmem:[#allocation5 + $0x1c0] sm:$0xf]
    %v267 = vld [vmem:[#allocation5 + $0x1c4] sm:$0xf]
    %v268 = vld [vmem:[#allocation5 + $0x1c8] sm:$0xf]
    %v269 = vld [vmem:[#allocation5 + $0x1cc] sm:$0xf]
    %v270 = vld [vmem:[#allocation5 + $0x1d0] sm:$0xf]
    %v271 = vld [vmem:[#allocation5 + $0x1d4] sm:$0xf]
    %v272 = vld [vmem:[#allocation5 + $0x1d8] sm:$0xf]
    %v273 = vld [vmem:[#allocation5 + $0x1dc] sm:$0xf]
    %v274 = vld [vmem:[#allocation5 + $0x1e0] sm:$0xf]
    %v275 = vld [vmem:[#allocation5 + $0x1e4] sm:$0xf]
    %v276 = vld [vmem:[#allocation5 + $0x1e8] sm:$0xf]
    %v277 = vld [vmem:[#allocation5 + $0x1ec] sm:$0xf]
    %v278 = vld [vmem:[#allocation5 + $0x1f0] sm:$0xf]
    %v279 = vld [vmem:[#allocation5 + $0x1f4] sm:$0xf]
    %v280 = vld [vmem:[#allocation5 + $0x1f8] sm:$0xf]
    %v281 = vld [vmem:[#allocation5 + $0x1fc] sm:$0xf]
    %v282 = vld [vmem:[#allocation5 + $0x200] sm:$0xf]
    %v283 = vld [vmem:[#allocation5 + $0x204] sm:$0xf]
    %v284 = vld [vmem:[#allocation5 + $0x208] sm:$0xf]
    %v285 = vld [vmem:[#allocation5 + $0x20c] sm:$0xf]
    %v286 = vld [vmem:[#allocation5 + $0x210] sm:$0xf]
    %v287 = vld [vmem:[#allocation5 + $0x214] sm:$0xf]
    %v288 = vld [vmem:[#allocation5 + $0x218] sm:$0xf]
    %v289 = vld [vmem:[#allocation5 + $0x21c] sm:$0xf]
    %v290 = vld [vmem:[#allocation5 + $0x220] sm:$0xf]
    %v291 = vld [vmem:[#allocation5 + $0x224] sm:$0xf]
    %v292 = vld [vmem:[#allocation5 + $0x228] sm:$0xf]
    %v293 = vld [vmem:[#allocation5 + $0x22c] sm:$0xf]
    %v294 = vld [vmem:[#allocation5 + $0x230] sm:$0xf]
    %v295 = vld [vmem:[#allocation5 + $0x234] sm:$0xf]
    %v296 = vld [vmem:[#allocation5 + $0x238] sm:$0xf]
    %v297 = vld [vmem:[#allocation5 + $0x23c] sm:$0xf]
    %v298 = vld [vmem:[#allocation5 + $0x240] sm:$0xf]
    %v299 = vld [vmem:[#allocation5 + $0x244] sm:$0xf]
    %v300 = vld [vmem:[#allocation5 + $0x248] sm:$0xf]
    %v301 = vld [vmem:[#allocation5 + $0x24c] sm:$0xf]
    %v302 = vld [vmem:[#allocation5 + $0x250] sm:$0xf]
    %v303 = vld [vmem:[#allocation5 + $0x254] sm:$0xf]
    %v304 = vld [vmem:[#allocation5 + $0x258] sm:$0xf]
    %v305 = vld [vmem:[#allocation5 + $0x25c] sm:$0xf]
    %v306 = vld [vmem:[#allocation5 + $0x260] sm:$0xf]
    %v307 = vld [vmem:[#allocation5 + $0x264] sm:$0xf]
    %v308 = vld [vmem:[#allocation5 + $0x268] sm:$0xf]
    %v309 = vld [vmem:[#allocation5 + $0x26c] sm:$0xf]
    %v310 = vld [vmem:[#allocation5 + $0x270] sm:$0xf]
    %v311 = vld [vmem:[#allocation5 + $0x274] sm:$0xf]
    %v312 = vld [vmem:[#allocation5 + $0x278] sm:$0xf]
    %v313 = vld [vmem:[#allocation5 + $0x27c] sm:$0xf]
    %v314 = vld [vmem:[#allocation5 + $0x280] sm:$0xf]
    %v315 = vld [vmem:[#allocation5 + $0x284] sm:$0xf]
    %v316 = vld [vmem:[#allocation5 + $0x288] sm:$0xf]
    %v317 = vld [vmem:[#allocation5 + $0x28c] sm:$0xf]
    %v318 = vld [vmem:[#allocation5 + $0x290] sm:$0xf]
    %v319 = vld [vmem:[#allocation5 + $0x294] sm:$0xf]
    %v320 = vld [vmem:[#allocation5 + $0x298] sm:$0xf]
    %v321 = vld [vmem:[#allocation5 + $0x29c] sm:$0xf]
    %v322 = vld [vmem:[#allocation5 + $0x2a0] sm:$0xf]
    %v323 = vld [vmem:[#allocation5 + $0x2a4] sm:$0xf]
    %v324 = vld [vmem:[#allocation5 + $0x2a8] sm:$0xf]
    %v325 = vld [vmem:[#allocation5 + $0x2ac] sm:$0xf]
    %v326 = vld [vmem:[#allocation5 + $0x2b0] sm:$0xf]
    %v327 = vld [vmem:[#allocation5 + $0x2b4] sm:$0xf]
    %v328 = vld [vmem:[#allocation5 + $0x2b8] sm:$0xf]
    %v329 = vld [vmem:[#allocation5 + $0x2bc] sm:$0xf]
    %v330 = vld [vmem:[#allocation5 + $0x2c0] sm:$0xf]
    %v331 = vld [vmem:[#allocation5 + $0x2c4] sm:$0xf]
    %v332 = vld [vmem:[#allocation5 + $0x2c8] sm:$0xf]
    %v333 = vld [vmem:[#allocation5 + $0x2cc] sm:$0xf]
    %v334 = vld [vmem:[#allocation5 + $0x2d0] sm:$0xf]
    %v335 = vld [vmem:[#allocation5 + $0x2d4] sm:$0xf]
    %v336 = vld [vmem:[#allocation5 + $0x2d8] sm:$0xf]
    %v337 = vld [vmem:[#allocation5 + $0x2dc] sm:$0xf]
    %v338 = vld [vmem:[#allocation5 + $0x2e0] sm:$0xf]
    %v339 = vld [vmem:[#allocation5 + $0x2e4] sm:$0xf]
    %v340 = vld [vmem:[#allocation5 + $0x2e8] sm:$0xf]
    %v341 = vld [vmem:[#allocation5 + $0x2ec] sm:$0xf]
    %v342 = vld [vmem:[#allocation5 + $0x2f0] sm:$0xf]
    %v343 = vld [vmem:[#allocation5 + $0x2f4] sm:$0xf]
    %v344 = vld [vmem:[#allocation5 + $0x2f8] sm:$0xf]
    %v345 = vld [vmem:[#allocation5 + $0x2fc] sm:$0xf]
    %v346 = vld [vmem:[#allocation5 + $0x300] sm:$0xf]
    %v347 = vld [vmem:[#allocation5 + $0x304] sm:$0xf]
    %v348 = vld [vmem:[#allocation5 + $0x308] sm:$0xf]
    %v349 = vld [vmem:[#allocation5 + $0x30c] sm:$0xf]
    %v350 = vld [vmem:[#allocation5 + $0x310] sm:$0xf]
    %v351 = vld [vmem:[#allocation5 + $0x314] sm:$0xf]
    %v352 = vld [vmem:[#allocation5 + $0x318] sm:$0xf]
    %v353 = vld [vmem:[#allocation5 + $0x31c] sm:$0xf]
    %v354 = vld [vmem:[#allocation5 + $0x320] sm:$0xf]
    %v355 = vld [vmem:[#allocation5 + $0x324] sm:$0xf]
    %v356 = vld [vmem:[#allocation5 + $0x328] sm:$0xf]
    %v357 = vld [vmem:[#allocation5 + $0x32c] sm:$0xf]
    %v358 = vld [vmem:[#allocation5 + $0x330] sm:$0xf]
    %v359 = vld [vmem:[#allocation5 + $0x334] sm:$0xf]
    %v360 = vld [vmem:[#allocation5 + $0x338] sm:$0xf]
    %v361 = vld [vmem:[#allocation5 + $0x33c] sm:$0xf]
    %v362 = vld [vmem:[#allocation5 + $0x340] sm:$0xf]
    %v363 = vld [vmem:[#allocation5 + $0x344] sm:$0xf]
    %v364 = vld [vmem:[#allocation5 + $0x348] sm:$0xf]
    %v365 = vld [vmem:[#allocation5 + $0x34c] sm:$0xf]
    %v366 = vld [vmem:[#allocation5 + $0x350] sm:$0xf]
    %v367 = vld [vmem:[#allocation5 + $0x354] sm:$0xf]
    %v368 = vld [vmem:[#allocation5 + $0x358] sm:$0xf]
    %v369 = vld [vmem:[#allocation5 + $0x35c] sm:$0xf]
    %v370 = vld [vmem:[#allocation5 + $0x360] sm:$0xf]
    %v371 = vld [vmem:[#allocation5 + $0x364] sm:$0xf]
    %v372 = vld [vmem:[#allocation5 + $0x368] sm:$0xf]
    %v373 = vld [vmem:[#allocation5 + $0x36c] sm:$0xf]
    %v374 = vld [vmem:[#allocation5 + $0x370] sm:$0xf]
    %v375 = vld [vmem:[#allocation5 + $0x374] sm:$0xf]
    %v376 = vld [vmem:[#allocation5 + $0x378] sm:$0xf]
    %v377 = vld [vmem:[#allocation5 + $0x37c] sm:$0xf]
    %v378 = vld [vmem:[#allocation5 + $0x380] sm:$0xf]
    %v379 = vld [vmem:[#allocation5 + $0x384] sm:$0xf]
    %v380 = vld [vmem:[#allocation5 + $0x388] sm:$0xf]
    %v381 = vld [vmem:[#allocation5 + $0x38c] sm:$0xf]
    %v382 = vld [vmem:[#allocation5 + $0x390] sm:$0xf]
    %v383 = vld [vmem:[#allocation5 + $0x394] sm:$0xf]
    %v384 = vld [vmem:[#allocation5 + $0x398] sm:$0xf]
    %v385 = vld [vmem:[#allocation5 + $0x39c] sm:$0xf]
    %v386 = vld [vmem:[#allocation5 + $0x3a0] sm:$0xf]
    %v387 = vld [vmem:[#allocation5 + $0x3a4] sm:$0xf]
    %v388 = vld [vmem:[#allocation5 + $0x3a8] sm:$0xf]
    %v389 = vld [vmem:[#allocation5 + $0x3ac] sm:$0xf]
    %v390 = vld [vmem:[#allocation5 + $0x3b0] sm:$0xf]
    %v391 = vld [vmem:[#allocation5 + $0x3b4] sm:$0xf]
    %v392 = vld [vmem:[#allocation5 + $0x3b8] sm:$0xf]
    %v393 = vld [vmem:[#allocation5 + $0x3bc] sm:$0xf]
    %v394 = vld [vmem:[#allocation5 + $0x3c0] sm:$0xf]
    %v395 = vld [vmem:[#allocation5 + $0x3c4] sm:$0xf]
    %v396 = vld [vmem:[#allocation5 + $0x3c8] sm:$0xf]
    %v397 = vld [vmem:[#allocation5 + $0x3cc] sm:$0xf]
    %v398 = vld [vmem:[#allocation5 + $0x3d0] sm:$0xf]
    %v399 = vld [vmem:[#allocation5 + $0x3d4] sm:$0xf]
    %v400 = vld [vmem:[#allocation5 + $0x3d8] sm:$0xf]
    %v401 = vld [vmem:[#allocation5 + $0x3dc] sm:$0xf]
    %v402 = vld [vmem:[#allocation5 + $0x3e0] sm:$0xf]
    %v403 = vld [vmem:[#allocation5 + $0x3e4] sm:$0xf]
    %v404 = vld [vmem:[#allocation5 + $0x3e8] sm:$0xf]
    %v405 = vld [vmem:[#allocation5 + $0x3ec] sm:$0xf]
    %v406 = vld [vmem:[#allocation5 + $0x3f0] sm:$0xf]
    %v407 = vld [vmem:[#allocation5 + $0x3f4] sm:$0xf]
    %v408 = vld [vmem:[#allocation5 + $0x3f8] sm:$0xf]
    %v409 = vld [vmem:[#allocation5 + $0x3fc] sm:$0xf]
    %v410 = vld [vmem:[%s2] sm:$0x1]
    %v412 = vlaneseq
    %v413 = vshrl.u32 %v412, 7
    %v414 = vsub.s32 0, %v413
    %v415 = vrot.slane %v410, %v414
    %v673 = vunpack.c.l.b16 %v154
    %v674 = vunpack.c.l.b16 %v155
    %v675 = vunpack.c.l.b16 %v156
    %v676 = vunpack.c.l.b16 %v157
    %v677 = vunpack.c.l.b16 %v158
    %v678 = vunpack.c.l.b16 %v159
    %v679 = vunpack.c.l.b16 %v160
    %v680 = vunpack.c.l.b16 %v161
    %v681 = vunpack.c.l.b16 %v162
    %v682 = vunpack.c.l.b16 %v163
    %v683 = vunpack.c.l.b16 %v164
    %v684 = vunpack.c.l.b16 %v165
    %v685 = vunpack.c.l.b16 %v166
    %v686 = vunpack.c.l.b16 %v167
    %v687 = vunpack.c.l.b16 %v168
    %v688 = vunpack.c.l.b16 %v169
    %v689 = vunpack.c.l.b16 %v170
    %v690 = vunpack.c.l.b16 %v171
    %v691 = vunpack.c.l.b16 %v172
    %v692 = vunpack.c.l.b16 %v173
    %v693 = vunpack.c.l.b16 %v174
    %v694 = vunpack.c.l.b16 %v175
    %v695 = vunpack.c.l.b16 %v176
    %v696 = vunpack.c.l.b16 %v177
    %v697 = vunpack.c.l.b16 %v178
    %v698 = vunpack.c.l.b16 %v179
    %v699 = vunpack.c.l.b16 %v180
    %v700 = vunpack.c.l.b16 %v181
    %v701 = vunpack.c.l.b16 %v182
    %v702 = vunpack.c.l.b16 %v183
    %v703 = vunpack.c.l.b16 %v184
    %v704 = vunpack.c.l.b16 %v185
    %v705 = vunpack.c.l.b16 %v186
    %v706 = vunpack.c.l.b16 %v187
    %v707 = vunpack.c.l.b16 %v188
    %v708 = vunpack.c.l.b16 %v189
    %v709 = vunpack.c.l.b16 %v190
    %v710 = vunpack.c.l.b16 %v191
    %v711 = vunpack.c.l.b16 %v192
    %v712 = vunpack.c.l.b16 %v193
    %v713 = vunpack.c.l.b16 %v194
    %v714 = vunpack.c.l.b16 %v195
    %v715 = vunpack.c.l.b16 %v196
    %v716 = vunpack.c.l.b16 %v197
    %v717 = vunpack.c.l.b16 %v198
    %v718 = vunpack.c.l.b16 %v199
    %v719 = vunpack.c.l.b16 %v200
    %v720 = vunpack.c.l.b16 %v201
    %v721 = vunpack.c.l.b16 %v202
    %v722 = vunpack.c.l.b16 %v203
    %v723 = vunpack.c.l.b16 %v204
    %v724 = vunpack.c.l.b16 %v205
    %v725 = vunpack.c.l.b16 %v206
    %v726 = vunpack.c.l.b16 %v207
    %v727 = vunpack.c.l.b16 %v208
    %v728 = vunpack.c.l.b16 %v209
    %v729 = vunpack.c.l.b16 %v210
    %v730 = vunpack.c.l.b16 %v211
    %v731 = vunpack.c.l.b16 %v212
    %v732 = vunpack.c.l.b16 %v213
    %v733 = vunpack.c.l.b16 %v214
    %v734 = vunpack.c.l.b16 %v215
    %v735 = vunpack.c.l.b16 %v216
    %v736 = vunpack.c.l.b16 %v217
    %v737 = vunpack.c.l.b16 %v218
    %v738 = vunpack.c.l.b16 %v219
    %v739 = vunpack.c.l.b16 %v220
    %v740 = vunpack.c.l.b16 %v221
    %v741 = vunpack.c.l.b16 %v222
    %v742 = vunpack.c.l.b16 %v223
    %v743 = vunpack.c.l.b16 %v224
    %v744 = vunpack.c.l.b16 %v225
    %v745 = vunpack.c.l.b16 %v226
    %v746 = vunpack.c.l.b16 %v227
    %v747 = vunpack.c.l.b16 %v228
    %v748 = vunpack.c.l.b16 %v229
    %v749 = vunpack.c.l.b16 %v230
    %v750 = vunpack.c.l.b16 %v231
    %v751 = vunpack.c.l.b16 %v232
    %v752 = vunpack.c.l.b16 %v233
    %v753 = vunpack.c.l.b16 %v234
    %v754 = vunpack.c.l.b16 %v235
    %v755 = vunpack.c.l.b16 %v236
    %v756 = vunpack.c.l.b16 %v237
    %v757 = vunpack.c.l.b16 %v238
    %v758 = vunpack.c.l.b16 %v239
    %v759 = vunpack.c.l.b16 %v240
    %v760 = vunpack.c.l.b16 %v241
    %v761 = vunpack.c.l.b16 %v242
    %v762 = vunpack.c.l.b16 %v243
    %v763 = vunpack.c.l.b16 %v244
    %v764 = vunpack.c.l.b16 %v245
    %v765 = vunpack.c.l.b16 %v246
    %v766 = vunpack.c.l.b16 %v247
    %v767 = vunpack.c.l.b16 %v248
    %v768 = vunpack.c.l.b16 %v249
    %v769 = vunpack.c.l.b16 %v250
    %v770 = vunpack.c.l.b16 %v251
    %v771 = vunpack.c.l.b16 %v252
    %v772 = vunpack.c.l.b16 %v253
    %v773 = vunpack.c.l.b16 %v254
    %v774 = vunpack.c.l.b16 %v255
    %v775 = vunpack.c.l.b16 %v256
    %v776 = vunpack.c.l.b16 %v257
    %v777 = vunpack.c.l.b16 %v258
    %v778 = vunpack.c.l.b16 %v259
    %v779 = vunpack.c.l.b16 %v260
    %v780 = vunpack.c.l.b16 %v261
    %v781 = vunpack.c.l.b16 %v262
    %v782 = vunpack.c.l.b16 %v263
    %v783 = vunpack.c.l.b16 %v264
    %v784 = vunpack.c.l.b16 %v265
    %v785 = vunpack.c.l.b16 %v266
    %v786 = vunpack.c.l.b16 %v267
    %v787 = vunpack.c.l.b16 %v268
    %v788 = vunpack.c.l.b16 %v269
    %v789 = vunpack.c.l.b16 %v270
    %v790 = vunpack.c.l.b16 %v271
    %v791 = vunpack.c.l.b16 %v272
    %v792 = vunpack.c.l.b16 %v273
    %v793 = vunpack.c.l.b16 %v274
    %v794 = vunpack.c.l.b16 %v275
    %v795 = vunpack.c.l.b16 %v276
    %v796 = vunpack.c.l.b16 %v277
    %v797 = vunpack.c.l.b16 %v278
    %v798 = vunpack.c.l.b16 %v279
    %v799 = vunpack.c.l.b16 %v280
    %v800 = vunpack.c.l.b16 %v281
    %v801 = vunpack.c.l.b16 %v282
    %v802 = vunpack.c.l.b16 %v283
    %v803 = vunpack.c.l.b16 %v284
    %v804 = vunpack.c.l.b16 %v285
    %v805 = vunpack.c.l.b16 %v286
    %v806 = vunpack.c.l.b16 %v287
    %v807 = vunpack.c.l.b16 %v288
    %v808 = vunpack.c.l.b16 %v289
    %v809 = vunpack.c.l.b16 %v290
    %v810 = vunpack.c.l.b16 %v291
    %v811 = vunpack.c.l.b16 %v292
    %v812 = vunpack.c.l.b16 %v293
    %v813 = vunpack.c.l.b16 %v294
    %v814 = vunpack.c.l.b16 %v295
    %v815 = vunpack.c.l.b16 %v296
    %v816 = vunpack.c.l.b16 %v297
    %v817 = vunpack.c.l.b16 %v298
    %v818 = vunpack.c.l.b16 %v299
    %v819 = vunpack.c.l.b16 %v300
    %v820 = vunpack.c.l.b16 %v301
    %v821 = vunpack.c.l.b16 %v302
    %v822 = vunpack.c.l.b16 %v303
    %v823 = vunpack.c.l.b16 %v304
    %v824 = vunpack.c.l.b16 %v305
    %v825 = vunpack.c.l.b16 %v306
    %v826 = vunpack.c.l.b16 %v307
    %v827 = vunpack.c.l.b16 %v308
    %v828 = vunpack.c.l.b16 %v309
    %v829 = vunpack.c.l.b16 %v310
    %v830 = vunpack.c.l.b16 %v311
    %v831 = vunpack.c.l.b16 %v312
    %v832 = vunpack.c.l.b16 %v313
    %v833 = vunpack.c.l.b16 %v314
    %v834 = vunpack.c.l.b16 %v315
    %v835 = vunpack.c.l.b16 %v316
    %v836 = vunpack.c.l.b16 %v317
    %v837 = vunpack.c.l.b16 %v318
    %v838 = vunpack.c.l.b16 %v319
    %v839 = vunpack.c.l.b16 %v320
    %v840 = vunpack.c.l.b16 %v321
    %v841 = vunpack.c.l.b16 %v322
    %v842 = vunpack.c.l.b16 %v323
    %v843 = vunpack.c.l.b16 %v324
    %v844 = vunpack.c.l.b16 %v325
    %v845 = vunpack.c.l.b16 %v326
    %v846 = vunpack.c.l.b16 %v327
    %v847 = vunpack.c.l.b16 %v328
    %v848 = vunpack.c.l.b16 %v329
    %v849 = vunpack.c.l.b16 %v330
    %v850 = vunpack.c.l.b16 %v331
    %v851 = vunpack.c.l.b16 %v332
    %v852 = vunpack.c.l.b16 %v333
    %v853 = vunpack.c.l.b16 %v334
    %v854 = vunpack.c.l.b16 %v335
    %v855 = vunpack.c.l.b16 %v336
    %v856 = vunpack.c.l.b16 %v337
    %v857 = vunpack.c.l.b16 %v338
    %v858 = vunpack.c.l.b16 %v339
    %v859 = vunpack.c.l.b16 %v340
    %v860 = vunpack.c.l.b16 %v341
    %v861 = vunpack.c.l.b16 %v342
    %v862 = vunpack.c.l.b16 %v343
    %v863 = vunpack.c.l.b16 %v344
    %v864 = vunpack.c.l.b16 %v345
    %v865 = vunpack.c.l.b16 %v346
    %v866 = vunpack.c.l.b16 %v347
    %v867 = vunpack.c.l.b16 %v348
    %v868 = vunpack.c.l.b16 %v349
    %v869 = vunpack.c.l.b16 %v350
    %v870 = vunpack.c.l.b16 %v351
    %v871 = vunpack.c.l.b16 %v352
    %v872 = vunpack.c.l.b16 %v353
    %v873 = vunpack.c.l.b16 %v354
    %v874 = vunpack.c.l.b16 %v355
    %v875 = vunpack.c.l.b16 %v356
    %v876 = vunpack.c.l.b16 %v357
    %v877 = vunpack.c.l.b16 %v358
    %v878 = vunpack.c.l.b16 %v359
    %v879 = vunpack.c.l.b16 %v360
    %v880 = vunpack.c.l.b16 %v361
    %v881 = vunpack.c.l.b16 %v362
    %v882 = vunpack.c.l.b16 %v363
    %v883 = vunpack.c.l.b16 %v364
    %v884 = vunpack.c.l.b16 %v365
    %v885 = vunpack.c.l.b16 %v366
    %v886 = vunpack.c.l.b16 %v367
    %v887 = vunpack.c.l.b16 %v368
    %v888 = vunpack.c.l.b16 %v369
    %v889 = vunpack.c.l.b16 %v370
    %v890 = vunpack.c.l.b16 %v371
    %v891 = vunpack.c.l.b16 %v372
    %v892 = vunpack.c.l.b16 %v373
    %v893 = vunpack.c.l.b16 %v374
    %v894 = vunpack.c.l.b16 %v375
    %v895 = vunpack.c.l.b16 %v376
    %v896 = vunpack.c.l.b16 %v377
    %v897 = vunpack.c.l.b16 %v378
    %v898 = vunpack.c.l.b16 %v379
    %v899 = vunpack.c.l.b16 %v380
    %v900 = vunpack.c.l.b16 %v381
    %v901 = vunpack.c.l.b16 %v382
    %v902 = vunpack.c.l.b16 %v383
    %v903 = vunpack.c.l.b16 %v384
    %v904 = vunpack.c.l.b16 %v385
    %v905 = vunpack.c.l.b16 %v386
    %v906 = vunpack.c.l.b16 %v387
    %v907 = vunpack.c.l.b16 %v388
    %v908 = vunpack.c.l.b16 %v389
    %v909 = vunpack.c.l.b16 %v390
    %v910 = vunpack.c.l.b16 %v391
    %v911 = vunpack.c.l.b16 %v392
    %v912 = vunpack.c.l.b16 %v393
    %v913 = vunpack.c.l.b16 %v394
    %v914 = vunpack.c.l.b16 %v395
    %v915 = vunpack.c.l.b16 %v396
    %v916 = vunpack.c.l.b16 %v397
    %v917 = vunpack.c.l.b16 %v398
    %v918 = vunpack.c.l.b16 %v399
    %v919 = vunpack.c.l.b16 %v400
    %v920 = vunpack.c.l.b16 %v401
    %v921 = vunpack.c.l.b16 %v402
    %v922 = vunpack.c.l.b16 %v403
    %v923 = vunpack.c.l.b16 %v404
    %v924 = vunpack.c.l.b16 %v405
    %v925 = vunpack.c.l.b16 %v406
    %v926 = vunpack.c.l.b16 %v407
    %v927 = vunpack.c.l.b16 %v408
    %v928 = vunpack.c.l.b16 %v409
    %v929 = vpack.c.b16 %v674, %v673
    %v930 = vpack.c.b16 %v676, %v675
    %v931 = vpack.c.b16 %v678, %v677
    %v932 = vpack.c.b16 %v680, %v679
    %v933 = vpack.c.b16 %v682, %v681
    %v934 = vpack.c.b16 %v684, %v683
    %v935 = vpack.c.b16 %v686, %v685
    %v936 = vpack.c.b16 %v688, %v687
    %v937 = vpack.c.b16 %v690, %v689
    %v938 = vpack.c.b16 %v692, %v691
    %v939 = vpack.c.b16 %v694, %v693
    %v940 = vpack.c.b16 %v696, %v695
    %v941 = vpack.c.b16 %v698, %v697
    %v942 = vpack.c.b16 %v700, %v699
    %v943 = vpack.c.b16 %v702, %v701
    %v944 = vpack.c.b16 %v704, %v703
    %v945 = vpack.c.b16 %v706, %v705
    %v946 = vpack.c.b16 %v708, %v707
    %v947 = vpack.c.b16 %v710, %v709
    %v948 = vpack.c.b16 %v712, %v711
    %v949 = vpack.c.b16 %v714, %v713
    %v950 = vpack.c.b16 %v716, %v715
    %v951 = vpack.c.b16 %v718, %v717
    %v952 = vpack.c.b16 %v720, %v719
    %v953 = vpack.c.b16 %v722, %v721
    %v954 = vpack.c.b16 %v724, %v723
    %v955 = vpack.c.b16 %v726, %v725
    %v956 = vpack.c.b16 %v728, %v727
    %v957 = vpack.c.b16 %v730, %v729
    %v958 = vpack.c.b16 %v732, %v731
    %v959 = vpack.c.b16 %v734, %v733
    %v960 = vpack.c.b16 %v736, %v735
    %v961 = vpack.c.b16 %v738, %v737
    %v962 = vpack.c.b16 %v740, %v739
    %v963 = vpack.c.b16 %v742, %v741
    %v964 = vpack.c.b16 %v744, %v743
    %v965 = vpack.c.b16 %v746, %v745
    %v966 = vpack.c.b16 %v748, %v747
    %v967 = vpack.c.b16 %v750, %v749
    %v968 = vpack.c.b16 %v752, %v751
    %v969 = vpack.c.b16 %v754, %v753
    %v970 = vpack.c.b16 %v756, %v755
    %v971 = vpack.c.b16 %v758, %v757
    %v972 = vpack.c.b16 %v760, %v759
    %v973 = vpack.c.b16 %v762, %v761
    %v974 = vpack.c.b16 %v764, %v763
    %v975 = vpack.c.b16 %v766, %v765
    %v976 = vpack.c.b16 %v768, %v767
    %v977 = vpack.c.b16 %v770, %v769
    %v978 = vpack.c.b16 %v772, %v771
    %v979 = vpack.c.b16 %v774, %v773
    %v980 = vpack.c.b16 %v776, %v775
    %v981 = vpack.c.b16 %v778, %v777
    %v982 = vpack.c.b16 %v780, %v779
    %v983 = vpack.c.b16 %v782, %v781
    %v984 = vpack.c.b16 %v784, %v783
    %v985 = vpack.c.b16 %v786, %v785
    %v986 = vpack.c.b16 %v788, %v787
    %v987 = vpack.c.b16 %v790, %v789
    %v988 = vpack.c.b16 %v792, %v791
    %v989 = vpack.c.b16 %v794, %v793
    %v990 = vpack.c.b16 %v796, %v795
    %v991 = vpack.c.b16 %v798, %v797
    %v992 = vpack.c.b16 %v800, %v799
    %v993 = vpack.c.b16 %v802, %v801
    %v994 = vpack.c.b16 %v804, %v803
    %v995 = vpack.c.b16 %v806, %v805
    %v996 = vpack.c.b16 %v808, %v807
    %v997 = vpack.c.b16 %v810, %v809
    %v998 = vpack.c.b16 %v812, %v811
    %v999 = vpack.c.b16 %v814, %v813
    %v1000 = vpack.c.b16 %v816, %v815
    %v1001 = vpack.c.b16 %v818, %v817
    %v1002 = vpack.c.b16 %v820, %v819
    %v1003 = vpack.c.b16 %v822, %v821
    %v1004 = vpack.c.b16 %v824, %v823
    %v1005 = vpack.c.b16 %v826, %v825
    %v1006 = vpack.c.b16 %v828, %v827
    %v1007 = vpack.c.b16 %v830, %v829
    %v1008 = vpack.c.b16 %v832, %v831
    %v1009 = vpack.c.b16 %v834, %v833
    %v1010 = vpack.c.b16 %v836, %v835
    %v1011 = vpack.c.b16 %v838, %v837
    %v1012 = vpack.c.b16 %v840, %v839
    %v1013 = vpack.c.b16 %v842, %v841
    %v1014 = vpack.c.b16 %v844, %v843
    %v1015 = vpack.c.b16 %v846, %v845
    %v1016 = vpack.c.b16 %v848, %v847
    %v1017 = vpack.c.b16 %v850, %v849
    %v1018 = vpack.c.b16 %v852, %v851
    %v1019 = vpack.c.b16 %v854, %v853
    %v1020 = vpack.c.b16 %v856, %v855
    %v1021 = vpack.c.b16 %v858, %v857
    %v1022 = vpack.c.b16 %v860, %v859
    %v1023 = vpack.c.b16 %v862, %v861
    %v1024 = vpack.c.b16 %v864, %v863
    %v1025 = vpack.c.b16 %v866, %v865
    %v1026 = vpack.c.b16 %v868, %v867
    %v1027 = vpack.c.b16 %v870, %v869
    %v1028 = vpack.c.b16 %v872, %v871
    %v1029 = vpack.c.b16 %v874, %v873
    %v1030 = vpack.c.b16 %v876, %v875
    %v1031 = vpack.c.b16 %v878, %v877
    %v1032 = vpack.c.b16 %v880, %v879
    %v1033 = vpack.c.b16 %v882, %v881
    %v1034 = vpack.c.b16 %v884, %v883
    %v1035 = vpack.c.b16 %v886, %v885
    %v1036 = vpack.c.b16 %v888, %v887
    %v1037 = vpack.c.b16 %v890, %v889
    %v1038 = vpack.c.b16 %v892, %v891
    %v1039 = vpack.c.b16 %v894, %v893
    %v1040 = vpack.c.b16 %v896, %v895
    %v1041 = vpack.c.b16 %v898, %v897
    %v1042 = vpack.c.b16 %v900, %v899
    %v1043 = vpack.c.b16 %v902, %v901
    %v1044 = vpack.c.b16 %v904, %v903
    %v1045 = vpack.c.b16 %v906, %v905
    %v1046 = vpack.c.b16 %v908, %v907
    %v1047 = vpack.c.b16 %v910, %v909
    %v1048 = vpack.c.b16 %v912, %v911
    %v1049 = vpack.c.b16 %v914, %v913
    %v1050 = vpack.c.b16 %v916, %v915
    %v1051 = vpack.c.b16 %v918, %v917
    %v1052 = vpack.c.b16 %v920, %v919
    %v1053 = vpack.c.b16 %v922, %v921
    %v1054 = vpack.c.b16 %v924, %v923
    %v1055 = vpack.c.b16 %v926, %v925
    %v1056 = vpack.c.b16 %v928, %v927
    %1185 = vmatprep.subr.bf16.mxu0 0
    %1186 = vmatpush1.bf16.msra.mxu0 %v936
    %1187 = vmatprep.subr.bf16.mxu0 0
    %1188 = vmatpush1.bf16.msra.mxu0 %v935
    %1189 = vmatprep.subr.bf16.mxu0 0
    %1190 = vmatpush1.bf16.msra.mxu0 %v934
    %1191 = vmatprep.subr.bf16.mxu0 0
    %1192 = vmatpush1.bf16.msra.mxu0 %v933
    %1193 = vmatprep.subr.bf16.mxu0 0
    %1194 = vmatpush1.bf16.msra.mxu0 %v932
    %1195 = vmatprep.subr.bf16.mxu0 0
    %1196 = vmatpush1.bf16.msra.mxu0 %v931
    %1197 = vmatprep.subr.bf16.mxu0 0
    %1198 = vmatpush1.bf16.msra.mxu0 %v930
    %1199 = vmatprep.subr.bf16.mxu0 0
    %1200 = vmatpush1.bf16.msra.mxu0 %v929
    %1201 = vmatprep.subr.bf16.mxu0 0
    %1202 = vmatpush2.bf16.msra.mxu0 %v944
    %1203 = vmatprep.subr.bf16.mxu0 0
    %1204 = vmatpush2.bf16.msra.mxu0 %v943
    %1205 = vmatprep.subr.bf16.mxu0 0
    %1206 = vmatpush2.bf16.msra.mxu0 %v942
    %1207 = vmatprep.subr.bf16.mxu0 0
    %1208 = vmatpush2.bf16.msra.mxu0 %v941
    %1209 = vmatprep.subr.bf16.mxu0 0
    %1210 = vmatpush2.bf16.msra.mxu0 %v940
    %1211 = vmatprep.subr.bf16.mxu0 0
    %1212 = vmatpush2.bf16.msra.mxu0 %v939
    %1213 = vmatprep.subr.bf16.mxu0 0
    %1214 = vmatpush2.bf16.msra.mxu0 %v938
    %1215 = vmatprep.subr.bf16.mxu0 0
    %1216 = vmatpush2.bf16.msra.mxu0 %v937
    %1217 = vmatprep.mubr.bf16.mxu0 %v139
    %1218 = vmatmul.mubr.bf16.gmra.mxu0 %v138
    %v1219 = vpop.f32.mrf.mxu0
    %v1220 = vadd.f32 %v415, %v1219
    %v1221 = vpop.f32.mrf.mxu0
    %v1222 = vpop.f32.mrf.mxu0
    %v1223 = vpop.f32.mrf.mxu0
    %1224 = vdwg.mxu0
    %1225 = vmatprep.subr.bf16.mxu0 0
    %1226 = vmatpush1.bf16.msra.mxu0 %v952
    %1227 = vmatprep.subr.bf16.mxu0 0
    %1228 = vmatpush1.bf16.msra.mxu0 %v951
    %1229 = vmatprep.subr.bf16.mxu0 0
    %1230 = vmatpush1.bf16.msra.mxu0 %v950
    %1231 = vmatprep.subr.bf16.mxu0 0
    %1232 = vmatpush1.bf16.msra.mxu0 %v949
    %1233 = vmatprep.subr.bf16.mxu0 0
    %1234 = vmatpush1.bf16.msra.mxu0 %v948
    %1235 = vmatprep.subr.bf16.mxu0 0
    %1236 = vmatpush1.bf16.msra.mxu0 %v947
    %1237 = vmatprep.subr.bf16.mxu0 0
    %1238 = vmatpush1.bf16.msra.mxu0 %v946
    %1239 = vmatprep.subr.bf16.mxu0 0
    %1240 = vmatpush1.bf16.msra.mxu0 %v945
    %1241 = vmatprep.subr.bf16.mxu0 0
    %1242 = vmatpush2.bf16.msra.mxu0 %v960
    %1243 = vmatprep.subr.bf16.mxu0 0
    %1244 = vmatpush2.bf16.msra.mxu0 %v959
    %1245 = vmatprep.subr.bf16.mxu0 0
    %1246 = vmatpush2.bf16.msra.mxu0 %v958
    %1247 = vmatprep.subr.bf16.mxu0 0
    %1248 = vmatpush2.bf16.msra.mxu0 %v957
    %1249 = vmatprep.subr.bf16.mxu0 0
    %1250 = vmatpush2.bf16.msra.mxu0 %v956
    %1251 = vmatprep.subr.bf16.mxu0 0
    %1252 = vmatpush2.bf16.msra.mxu0 %v955
    %1253 = vmatprep.subr.bf16.mxu0 0
    %1254 = vmatpush2.bf16.msra.mxu0 %v954
    %1255 = vmatprep.subr.bf16.mxu0 0
    %1256 = vmatpush2.bf16.msra.mxu0 %v953
    %1257 = vmatprep.mubr.bf16.mxu0 %v141
    %1258 = vmatmul.mubr.bf16.gmra.mxu0 %v140
    %v1259 = vpop.f32.mrf.mxu0
    %v1260 = vadd.f32 %v1220, %v1259
    %v1261 = vpop.f32.mrf.mxu0
    %v1262 = vpop.f32.mrf.mxu0
    %v1263 = vpop.f32.mrf.mxu0
    %1264 = vdwg.mxu0
    %1265 = vmatprep.subr.bf16.mxu0 0
    %1266 = vmatpush1.bf16.msra.mxu0 %v968
    %1267 = vmatprep.subr.bf16.mxu0 0
    %1268 = vmatpush1.bf16.msra.mxu0 %v967
    %1269 = vmatprep.subr.bf16.mxu0 0
    %1270 = vmatpush1.bf16.msra.mxu0 %v966
    %1271 = vmatprep.subr.bf16.mxu0 0
    %1272 = vmatpush1.bf16.msra.mxu0 %v965
    %1273 = vmatprep.subr.bf16.mxu0 0
    %1274 = vmatpush1.bf16.msra.mxu0 %v964
    %1275 = vmatprep.subr.bf16.mxu0 0
    %1276 = vmatpush1.bf16.msra.mxu0 %v963
    %1277 = vmatprep.subr.bf16.mxu0 0
    %1278 = vmatpush1.bf16.msra.mxu0 %v962
    %1279 = vmatprep.subr.bf16.mxu0 0
    %1280 = vmatpush1.bf16.msra.mxu0 %v961
    %1281 = vmatprep.subr.bf16.mxu0 0
    %1282 = vmatpush2.bf16.msra.mxu0 %v976
    %1283 = vmatprep.subr.bf16.mxu0 0
    %1284 = vmatpush2.bf16.msra.mxu0 %v975
    %1285 = vmatprep.subr.bf16.mxu0 0
    %1286 = vmatpush2.bf16.msra.mxu0 %v974
    %1287 = vmatprep.subr.bf16.mxu0 0
    %1288 = vmatpush2.bf16.msra.mxu0 %v973
    %1289 = vmatprep.subr.bf16.mxu0 0
    %1290 = vmatpush2.bf16.msra.mxu0 %v972
    %1291 = vmatprep.subr.bf16.mxu0 0
    %1292 = vmatpush2.bf16.msra.mxu0 %v971
    %1293 = vmatprep.subr.bf16.mxu0 0
    %1294 = vmatpush2.bf16.msra.mxu0 %v970
    %1295 = vmatprep.subr.bf16.mxu0 0
    %1296 = vmatpush2.bf16.msra.mxu0 %v969
    %1297 = vmatprep.mubr.bf16.mxu0 %v143
    %1298 = vmatmul.mubr.bf16.gmra.mxu0 %v142
    %v1299 = vpop.f32.mrf.mxu0
    %v1300 = vadd.f32 %v1260, %v1299
    %v1301 = vpop.f32.mrf.mxu0
    %v1302 = vpop.f32.mrf.mxu0
    %v1303 = vpop.f32.mrf.mxu0
    %1304 = vdwg.mxu0
    %1305 = vmatprep.subr.bf16.mxu0 0
    %1306 = vmatpush1.bf16.msra.mxu0 %v984
    %1307 = vmatprep.subr.bf16.mxu0 0
    %1308 = vmatpush1.bf16.msra.mxu0 %v983
    %1309 = vmatprep.subr.bf16.mxu0 0
    %1310 = vmatpush1.bf16.msra.mxu0 %v982
    %1311 = vmatprep.subr.bf16.mxu0 0
    %1312 = vmatpush1.bf16.msra.mxu0 %v981
    %1313 = vmatprep.subr.bf16.mxu0 0
    %1314 = vmatpush1.bf16.msra.mxu0 %v980
    %1315 = vmatprep.subr.bf16.mxu0 0
    %1316 = vmatpush1.bf16.msra.mxu0 %v979
    %1317 = vmatprep.subr.bf16.mxu0 0
    %1318 = vmatpush1.bf16.msra.mxu0 %v978
    %1319 = vmatprep.subr.bf16.mxu0 0
    %1320 = vmatpush1.bf16.msra.mxu0 %v977
    %1321 = vmatprep.subr.bf16.mxu0 0
    %1322 = vmatpush2.bf16.msra.mxu0 %v992
    %1323 = vmatprep.subr.bf16.mxu0 0
    %1324 = vmatpush2.bf16.msra.mxu0 %v991
    %1325 = vmatprep.subr.bf16.mxu0 0
    %1326 = vmatpush2.bf16.msra.mxu0 %v990
    %1327 = vmatprep.subr.bf16.mxu0 0
    %1328 = vmatpush2.bf16.msra.mxu0 %v989
    %1329 = vmatprep.subr.bf16.mxu0 0
    %1330 = vmatpush2.bf16.msra.mxu0 %v988
    %1331 = vmatprep.subr.bf16.mxu0 0
    %1332 = vmatpush2.bf16.msra.mxu0 %v987
    %1333 = vmatprep.subr.bf16.mxu0 0
    %1334 = vmatpush2.bf16.msra.mxu0 %v986
    %1335 = vmatprep.subr.bf16.mxu0 0
    %1336 = vmatpush2.bf16.msra.mxu0 %v985
    %1337 = vmatprep.mubr.bf16.mxu0 %v145
    %1338 = vmatmul.mubr.bf16.gmra.mxu0 %v144
    %v1339 = vpop.f32.mrf.mxu0
    %v1340 = vadd.f32 %v1300, %v1339
    %v1341 = vpop.f32.mrf.mxu0
    %v1342 = vpop.f32.mrf.mxu0
    %v1343 = vpop.f32.mrf.mxu0
    %1344 = vdwg.mxu0
    %1345 = vmatprep.subr.bf16.mxu0 0
    %1346 = vmatpush1.bf16.msra.mxu0 %v1000
    %1347 = vmatprep.subr.bf16.mxu0 0
    %1348 = vmatpush1.bf16.msra.mxu0 %v999
    %1349 = vmatprep.subr.bf16.mxu0 0
    %1350 = vmatpush1.bf16.msra.mxu0 %v998
    %1351 = vmatprep.subr.bf16.mxu0 0
    %1352 = vmatpush1.bf16.msra.mxu0 %v997
    %1353 = vmatprep.subr.bf16.mxu0 0
    %1354 = vmatpush1.bf16.msra.mxu0 %v996
    %1355 = vmatprep.subr.bf16.mxu0 0
    %1356 = vmatpush1.bf16.msra.mxu0 %v995
    %1357 = vmatprep.subr.bf16.mxu0 0
    %1358 = vmatpush1.bf16.msra.mxu0 %v994
    %1359 = vmatprep.subr.bf16.mxu0 0
    %1360 = vmatpush1.bf16.msra.mxu0 %v993
    %1361 = vmatprep.subr.bf16.mxu0 0
    %1362 = vmatpush2.bf16.msra.mxu0 %v1008
    %1363 = vmatprep.subr.bf16.mxu0 0
    %1364 = vmatpush2.bf16.msra.mxu0 %v1007
    %1365 = vmatprep.subr.bf16.mxu0 0
    %1366 = vmatpush2.bf16.msra.mxu0 %v1006
    %1367 = vmatprep.subr.bf16.mxu0 0
    %1368 = vmatpush2.bf16.msra.mxu0 %v1005
    %1369 = vmatprep.subr.bf16.mxu0 0
    %1370 = vmatpush2.bf16.msra.mxu0 %v1004
    %1371 = vmatprep.subr.bf16.mxu0 0
    %1372 = vmatpush2.bf16.msra.mxu0 %v1003
    %1373 = vmatprep.subr.bf16.mxu0 0
    %1374 = vmatpush2.bf16.msra.mxu0 %v1002
    %1375 = vmatprep.subr.bf16.mxu0 0
    %1376 = vmatpush2.bf16.msra.mxu0 %v1001
    %1377 = vmatprep.mubr.bf16.mxu0 %v147
    %1378 = vmatmul.mubr.bf16.gmra.mxu0 %v146
    %v1379 = vpop.f32.mrf.mxu0
    %v1380 = vadd.f32 %v1340, %v1379
    %v1381 = vpop.f32.mrf.mxu0
    %v1382 = vpop.f32.mrf.mxu0
    %v1383 = vpop.f32.mrf.mxu0
    %1384 = vdwg.mxu0
    %1385 = vmatprep.subr.bf16.mxu0 0
    %1386 = vmatpush1.bf16.msra.mxu0 %v1016
    %1387 = vmatprep.subr.bf16.mxu0 0
    %1388 = vmatpush1.bf16.msra.mxu0 %v1015
    %1389 = vmatprep.subr.bf16.mxu0 0
    %1390 = vmatpush1.bf16.msra.mxu0 %v1014
    %1391 = vmatprep.subr.bf16.mxu0 0
    %1392 = vmatpush1.bf16.msra.mxu0 %v1013
    %1393 = vmatprep.subr.bf16.mxu0 0
    %1394 = vmatpush1.bf16.msra.mxu0 %v1012
    %1395 = vmatprep.subr.bf16.mxu0 0
    %1396 = vmatpush1.bf16.msra.mxu0 %v1011
    %1397 = vmatprep.subr.bf16.mxu0 0
    %1398 = vmatpush1.bf16.msra.mxu0 %v1010
    %1399 = vmatprep.subr.bf16.mxu0 0
    %1400 = vmatpush1.bf16.msra.mxu0 %v1009
    %1401 = vmatprep.subr.bf16.mxu0 0
    %1402 = vmatpush2.bf16.msra.mxu0 %v1024
    %1403 = vmatprep.subr.bf16.mxu0 0
    %1404 = vmatpush2.bf16.msra.mxu0 %v1023
    %1405 = vmatprep.subr.bf16.mxu0 0
    %1406 = vmatpush2.bf16.msra.mxu0 %v1022
    %1407 = vmatprep.subr.bf16.mxu0 0
    %1408 = vmatpush2.bf16.msra.mxu0 %v1021
    %1409 = vmatprep.subr.bf16.mxu0 0
    %1410 = vmatpush2.bf16.msra.mxu0 %v1020
    %1411 = vmatprep.subr.bf16.mxu0 0
    %1412 = vmatpush2.bf16.msra.mxu0 %v1019
    %1413 = vmatprep.subr.bf16.mxu0 0
    %1414 = vmatpush2.bf16.msra.mxu0 %v1018
    %1415 = vmatprep.subr.bf16.mxu0 0
    %1416 = vmatpush2.bf16.msra.mxu0 %v1017
    %1417 = vmatprep.mubr.bf16.mxu0 %v149
    %1418 = vmatmul.mubr.bf16.gmra.mxu0 %v148
    %v1419 = vpop.f32.mrf.mxu0
    %v1420 = vadd.f32 %v1380, %v1419
    %v1421 = vpop.f32.mrf.mxu0
    %v1422 = vpop.f32.mrf.mxu0
    %v1423 = vpop.f32.mrf.mxu0
    %1424 = vdwg.mxu0
    %1425 = vmatprep.subr.bf16.mxu0 0
    %1426 = vmatpush1.bf16.msra.mxu0 %v1032
    %1427 = vmatprep.subr.bf16.mxu0 0
    %1428 = vmatpush1.bf16.msra.mxu0 %v1031
    %1429 = vmatprep.subr.bf16.mxu0 0
    %1430 = vmatpush1.bf16.msra.mxu0 %v1030
    %1431 = vmatprep.subr.bf16.mxu0 0
    %1432 = vmatpush1.bf16.msra.mxu0 %v1029
    %1433 = vmatprep.subr.bf16.mxu0 0
    %1434 = vmatpush1.bf16.msra.mxu0 %v1028
    %1435 = vmatprep.subr.bf16.mxu0 0
    %1436 = vmatpush1.bf16.msra.mxu0 %v1027
    %1437 = vmatprep.subr.bf16.mxu0 0
    %1438 = vmatpush1.bf16.msra.mxu0 %v1026
    %1439 = vmatprep.subr.bf16.mxu0 0
    %1440 = vmatpush1.bf16.msra.mxu0 %v1025
    %1441 = vmatprep.subr.bf16.mxu0 0
    %1442 = vmatpush2.bf16.msra.mxu0 %v1040
    %1443 = vmatprep.subr.bf16.mxu0 0
    %1444 = vmatpush2.bf16.msra.mxu0 %v1039
    %1445 = vmatprep.subr.bf16.mxu0 0
    %1446 = vmatpush2.bf16.msra.mxu0 %v1038
    %1447 = vmatprep.subr.bf16.mxu0 0
    %1448 = vmatpush2.bf16.msra.mxu0 %v1037
    %1449 = vmatprep.subr.bf16.mxu0 0
    %1450 = vmatpush2.bf16.msra.mxu0 %v1036
    %1451 = vmatprep.subr.bf16.mxu0 0
    %1452 = vmatpush2.bf16.msra.mxu0 %v1035
    %1453 = vmatprep.subr.bf16.mxu0 0
    %1454 = vmatpush2.bf16.msra.mxu0 %v1034
    %1455 = vmatprep.subr.bf16.mxu0 0
    %1456 = vmatpush2.bf16.msra.mxu0 %v1033
    %1457 = vmatprep.mubr.bf16.mxu0 %v151
    %1458 = vmatmul.mubr.bf16.gmra.mxu0 %v150
    %v1459 = vpop.f32.mrf.mxu0
    %v1460 = vadd.f32 %v1420, %v1459
    %v1461 = vpop.f32.mrf.mxu0
    %v1462 = vpop.f32.mrf.mxu0
    %v1463 = vpop.f32.mrf.mxu0
    %1464 = vdwg.mxu0
    %1465 = vmatprep.subr.bf16.mxu0 0
    %1466 = vmatpush1.bf16.msra.mxu0 %v1048
    %1467 = vmatprep.subr.bf16.mxu0 0
    %1468 = vmatpush1.bf16.msra.mxu0 %v1047
    %1469 = vmatprep.subr.bf16.mxu0 0
    %1470 = vmatpush1.bf16.msra.mxu0 %v1046
    %1471 = vmatprep.subr.bf16.mxu0 0
    %1472 = vmatpush1.bf16.msra.mxu0 %v1045
    %1473 = vmatprep.subr.bf16.mxu0 0
    %1474 = vmatpush1.bf16.msra.mxu0 %v1044
    %1475 = vmatprep.subr.bf16.mxu0 0
    %1476 = vmatpush1.bf16.msra.mxu0 %v1043
    %1477 = vmatprep.subr.bf16.mxu0 0
    %1478 = vmatpush1.bf16.msra.mxu0 %v1042
    %1479 = vmatprep.subr.bf16.mxu0 0
    %1480 = vmatpush1.bf16.msra.mxu0 %v1041
    %1481 = vmatprep.subr.bf16.mxu0 0
    %1482 = vmatpush2.bf16.msra.mxu0 %v1056
    %1483 = vmatprep.subr.bf16.mxu0 0
    %1484 = vmatpush2.bf16.msra.mxu0 %v1055
    %1485 = vmatprep.subr.bf16.mxu0 0
    %1486 = vmatpush2.bf16.msra.mxu0 %v1054
    %1487 = vmatprep.subr.bf16.mxu0 0
    %1488 = vmatpush2.bf16.msra.mxu0 %v1053
    %1489 = vmatprep.subr.bf16.mxu0 0
    %1490 = vmatpush2.bf16.msra.mxu0 %v1052
    %1491 = vmatprep.subr.bf16.mxu0 0
    %1492 = vmatpush2.bf16.msra.mxu0 %v1051
    %1493 = vmatprep.subr.bf16.mxu0 0
    %1494 = vmatpush2.bf16.msra.mxu0 %v1050
    %1495 = vmatprep.subr.bf16.mxu0 0
    %1496 = vmatpush2.bf16.msra.mxu0 %v1049
    %1497 = vmatprep.mubr.bf16.mxu0 %v153
    %1498 = vmatmul.mubr.bf16.gmra.mxu0 %v152
    %v1499 = vpop.f32.mrf.mxu0
    %v1500 = vadd.f32 %v1460, %v1499
    %v1501 = vpop.f32.mrf.mxu0
    %v1502 = vpop.f32.mrf.mxu0
    %v1503 = vpop.f32.mrf.mxu0
    %1504 = vdwg.mxu0
    %v1505 = vlaneseq
    %v1506 = vand.u32 %v1505, 127
    %vm1507 = vcmp.ge.s32.totalorder %v1506, 48
    %vm1508 = vcmp.lt.s32.totalorder %v1506, 51
    %vm1509 = vmand %vm1507, %vm1508
    %v1510 = vsel %vm1509, %v1500, -inf
    %vm1511 = vcmask 1041408
    %v1512 = vsel %vm1511, %v1510, -inf
    %1513 = vmax.xlane.f32.xlu0 %v1512
    %v1514 = vpop.xlane.xlu0 %1513
    %v1515 = vsub.f32 %v1510, %v1514
    %v1516 = vmul.f32 %v1515, 1.442695
    %v1517 = vpow.pop %v1516
    %v1518 = vsel %vm1511, %v1517, 0.0
    %1519 = vadd.xlane.f32.xlu0 %v1518
    %v1520 = vpop.xlane.xlu0 %1519
    %v1521 = vrcp.pop %v1520
    %v1522 = vmul.f32 %v1517, %v1521
    %v1523 = vsel %vm1509, %v1522, %v1500
    %1524 = vst [vmem:[#allocation7] sm:$0x3] %v1523
    // Predicated region
    $region22: #{tpu_custom_call.1} parent=1 // pred_check
      _
    $region23: #{tpu_custom_call.1} parent=1 // pred_check_branch
      %1526 = sbr.rel (0) target = $region25
    $region24: #{tpu_custom_call.1} parent=1 // pred_region
      %s1528 = ssub.s32 32, 32
      %1529 = vsyncadd [#allocation4], %s1528
      %s1531 = sshll.u32 [#allocation7], 4
      %s1532 = int_to_ptr.vmem [resolvable:$true] %s1531
      %1534 = dma.vmem_to_hbm [thread:$0]  %s1532, 32, %s3, [#allocation4]
    $region25: #{tpu_custom_call.1} parent=1 // pred_fallthru
      _
    // Predicated region
    $region26: #{tpu_custom_call.1} parent=1 // pred_check
      _
    $region27: #{tpu_custom_call.1} parent=1 // pred_check_branch
      %1536 = sbr.rel (0) target = $region29
    $region28: #{tpu_custom_call.1} parent=1 // pred_region
      %1537 = dma.done [#allocation4], 32
    $region29: #{tpu_custom_call.1} parent=1 // pred_fallthru
      _
    %1538 = vsyncpa [#allocation3], 1
    %1539 = vsyncpa [#allocation6], 1
    %1540 = vsyncpa [#allocation4], 1

</llo_original>
